<compile_context>
chip_gen: v6e
topology: v6e:2x2x1
jax: 0.10.0
libtpu: 0.0.40
codegen_flags: <defaults>
</compile_context>

<pallas_src>
import jax
import jax.numpy as jnp
import numpy as np
from jax.experimental import pallas as pl

# ---------------- config (synthetic, deterministic) ----------------
N_HEADS = 4
D_EMBED = 32
D_HEAD = D_EMBED // N_HEADS
SEQ = 8
BATCH = 2
EXPANSION_FACTOR = 4            # transformer_config['expansion_factor']
D_FF = D_EMBED * EXPANSION_FACTOR
LN_EPS = 1e-5
NEG_BIG = -1e30

BS = BATCH * SEQ                # folded (batch*seq) rows = 16
NC = N_HEADS * BS               # all-head score columns  = 64


# ---------------- Pallas kernel ----------------
def decoder_block_kernel(x_ref, ek_ref, ev_ref, maskp_ref, attnw_ref, ffnw_ref,
                         vec_ref, out_ref):
    f32, bf16 = jnp.float32, jnp.bfloat16

    x = x_ref[...]                                        # (BS, D) f32

    # packed mask slab: rows [keep1; fill1; keep2; fill2], lanes [NC:NC+D] = head_sel
    keep1 = maskp_ref[0 * BS:1 * BS, 0:NC]
    fill1 = maskp_ref[1 * BS:2 * BS, 0:NC]
    keep2 = maskp_ref[2 * BS:3 * BS, 0:NC]
    fill2 = maskp_ref[3 * BS:4 * BS, 0:NC]
    head_sel = maskp_ref[:, NC:NC + D_EMBED]              # (NC, D) 0/1
    hs_b = head_sel.astype(bf16)

    # packed attention weights (bf16): [Wk1 | Wq1*s | Wv1 | Wk2 | Wv2 | Wq2*s]
    w_kqv1 = attnw_ref[:, 0:3 * D_EMBED]                  # (D, 3D)
    w_kv2 = attnw_ref[:, 3 * D_EMBED:5 * D_EMBED]         # (D, 2D)
    w_q2 = attnw_ref[:, 5 * D_EMBED:6 * D_EMBED]          # (D, D)

    # packed FFN weights (bf16): [w1 ; w2^T]
    w1 = ffnw_ref[0:D_EMBED, :]                           # (D, D_FF)
    w2t = ffnw_ref[D_EMBED:2 * D_EMBED, :]                # (D, D_FF) = w2^T

    # packed vectors (f32, one (8,128) tile)
    b1 = vec_ref[0:1, :]                                  # (1, D_FF)
    b2 = vec_ref[1:2, 0:D_EMBED]
    g1 = vec_ref[2:3, 0:D_EMBED]
    be1 = vec_ref[3:4, 0:D_EMBED]
    g2 = vec_ref[4:5, 0:D_EMBED]
    be2 = vec_ref[5:6, 0:D_EMBED]
    g3 = vec_ref[6:7, 0:D_EMBED]
    be3 = vec_ref[7:8, 0:D_EMBED]

    def layer_norm(h, g, b):
        mu = jnp.mean(h, axis=-1, keepdims=True)
        c = h - mu
        var = jnp.mean(c * c, axis=-1, keepdims=True)
        return c * jax.lax.rsqrt(var + LN_EPS) * g + b

    def attention(q_all, k_all, v_all, keep, fill):
        # Replicate K/V into per-head row blocks and zero non-head columns so that
        # ALL heads' scores come from one matmul and PV is one matmul whose result
        # is already the concatenated (BS, D) per-head output.
        krep = (jnp.concatenate([k_all] * N_HEADS, axis=0) * head_sel).astype(bf16)  # (NC, D)
        vrep = (jnp.concatenate([v_all] * N_HEADS, axis=0) * head_sel).astype(bf16)  # (NC, D)
        # scores[:, h*BS + j] = q_h . k_h[j]   (contract dim 1 of both; no explicit .T)
        s = jax.lax.dot_general(q_all.astype(bf16), krep, (((1,), (1,)), ((), ())),
                                preferred_element_type=f32)                           # (BS, NC)
        # keep in {0,1}; fill = 1e-19 on torch-masked same-batch cols, -1e30 cross-batch.
        s = s * keep + fill
        # One global row max is a valid shift for every 16-col head block (softmax is
        # shift-invariant per block); every row/head keeps a finite entry -> no 0/0.
        s = s - jnp.max(s, axis=-1, keepdims=True)
        p = jnp.exp(s)                        # cross-batch entries become exactly 0
        pb = p.astype(bf16)
        o_un = jnp.dot(pb, vrep, preferred_element_type=f32)   # (BS, D) unnormalized
        den = jnp.dot(pb, hs_b, preferred_element_type=f32)    # per-head sums broadcast
        return o_un / den                                       # exact f32 normalization

    # ---- 1) masked self-attention: fused K|Q|V projection (one MXU pass) ----
    xb = x.astype(bf16)
    kqv1 = jnp.dot(xb, w_kqv1, preferred_element_type=f32)      # (BS, 3D)
    k1 = kqv1[:, 0:D_EMBED]
    q1 = kqv1[:, D_EMBED:2 * D_EMBED]                           # 1/sqrt(d_head) pre-folded
    v1 = kqv1[:, 2 * D_EMBED:3 * D_EMBED]
    op1 = attention(q1, k1, v1, keep1, fill1)
    n1 = layer_norm(op1 + x, g1, be1)

    # ---- 2) cross-attention: K/V fused via row-stacked [ek; ev] (one MXU pass) ----
    ekvb = jnp.concatenate([ek_ref[...], ev_ref[...]], axis=0).astype(bf16)  # (2BS, D)
    kv2 = jnp.dot(ekvb, w_kv2, preferred_element_type=f32)       # (2BS, 2D)
    k2 = kv2[0:BS, 0:D_EMBED]                                    # ek @ Wk2
    v2 = kv2[BS:2 * BS, D_EMBED:2 * D_EMBED]                     # ev @ Wv2
    q2 = jnp.dot(n1.astype(bf16), w_q2, preferred_element_type=f32)
    op2 = attention(q2, k2, v2, keep2, fill2)
    n2 = layer_norm(op2 + n1, g2, be2)

    # ---- 3) feed-forward ----
    h = jnp.dot(n2.astype(bf16), w1, preferred_element_type=f32) + b1
    h = jnp.maximum(h, 0.0)
    ff = jax.lax.dot_general(h.astype(bf16), w2t, (((1,), (1,)), ((), ())),
                             preferred_element_type=f32) + b2
    out_ref[...] = layer_norm(ff + n2, g3, be3)


# ---------------- one-time constant preparation (init, NOT per call) ----------------
def prepare_decoder_constants(params, mask):
    assert D_FF <= 128, "vector slab packs b1 into a single 128-lane row"
    eye_h = np.eye(N_HEADS, dtype=np.float32)
    scale = np.float32(1.0 / np.sqrt(D_HEAD))

    def bd(w):  # block-diagonal expansion: all heads share the same (d_head,d_head) weight
        return np.kron(eye_h, np.asarray(w, np.float32))

    attn_w = np.concatenate(
        [bd(params["wk1"]), bd(params["wq1"]) * scale, bd(params["wv1"]),
         bd(params["wk2"]), bd(params["wv2"]), bd(params["wq2"]) * scale], axis=1)  # (D, 6D)

    ffn_w = np.concatenate([np.asarray(params["w1"], np.float32),
                            np.asarray(params["w2"], np.float32).T], axis=0)        # (2D, D_FF)

    vecs = np.zeros((8, 128), np.float32)
    vecs[0, :D_FF] = np.asarray(params["b1"]).reshape(-1)
    vecs[1, :D_EMBED] = np.asarray(params["b2"]).reshape(-1)
    vecs[2, :D_EMBED] = np.asarray(params["g1"]).reshape(-1)
    vecs[3, :D_EMBED] = np.asarray(params["be1"]).reshape(-1)
    vecs[4, :D_EMBED] = np.asarray(params["g2"]).reshape(-1)
    vecs[5, :D_EMBED] = np.asarray(params["be2"]).reshape(-1)
    vecs[6, :D_EMBED] = np.asarray(params["g3"]).reshape(-1)
    vecs[7, :D_EMBED] = np.asarray(params["be3"]).reshape(-1)

    # score mask/bias pack for the folded-batch, all-heads (BS, N_HEADS*BS) score layout
    r = np.arange(BS)[:, None]                   # query folded row
    c = np.arange(NC)[None, :]                   # score column: head = c//BS, key row = c%BS
    k_row = c % BS
    same = (r // SEQ) == (k_row // SEQ)          # same-batch key?
    m = np.asarray(mask, np.float32)             # (SEQ, SEQ); 0 = masked
    visible = m[(r % SEQ), (k_row % SEQ)] != 0.0
    keep1 = (same & visible).astype(np.float32)
    fill1 = np.where(same & ~visible, np.float32(1e-19), np.float32(0.0))
    fill1 = np.where(same, fill1, np.float32(NEG_BIG)).astype(np.float32)
    keep2 = same.astype(np.float32)
    fill2 = np.where(same, np.float32(0.0), np.float32(NEG_BIG)).astype(np.float32)

    head_sel = ((np.arange(D_EMBED)[None, :] // D_HEAD) ==
                (np.arange(NC)[:, None] // BS)).astype(np.float32)                  # (NC, D)

    maskp = np.concatenate(
        [np.concatenate([keep1, fill1, keep2, fill2], axis=0), head_sel], axis=1)   # (NC, NC+D)

    return {
        "maskp": jnp.asarray(maskp, jnp.float32),
        "attn_w": jnp.asarray(attn_w).astype(jnp.bfloat16),
        "ffn_w": jnp.asarray(ffn_w).astype(jnp.bfloat16),
        "vecs": jnp.asarray(vecs, jnp.float32),
    }


# ---------------- per-call wrapper (reshape + kernel only) ----------------
@jax.jit
def decoder_block(x, enc_k, enc_v, consts):
    B, S, D = x.shape
    out = pl.pallas_call(
        decoder_block_kernel,
        out_shape=jax.ShapeDtypeStruct((B * S, D), jnp.float32),
        # No grid: the whole problem is one VMEM-resident block (a few tens of KB),
        # so there is no per-step pipeline overhead at these toy shapes.
    )(x.reshape(B * S, D), enc_k.reshape(B * S, D), enc_v.reshape(B * S, D),
      consts["maskp"], consts["attn_w"], consts["ffn_w"], consts["vecs"])
    return out.reshape(B, S, D)


# ---------------- pure-JAX reference (f32, faithful to the PyTorch module) ----------------
def mha_ref(k, q, v, wk, wq, wv, mask):
    b, s, _ = k.shape
    k = k.reshape(b, s, N_HEADS, D_HEAD) @ wk
    q = q.reshape(b, s, N_HEADS, D_HEAD) @ wq
    v = v.reshape(b, s, N_HEADS, D_HEAD) @ wv
    k = jnp.transpose(k, (0, 2, 1, 3))
    q = jnp.transpose(q, (0, 2, 1, 3))
    v = jnp.transpose(v, (0, 2, 1, 3))
    s_ = jnp.einsum("bhqd,bhkd->bhqk", q, k) / np.sqrt(D_HEAD)
    if mask is not None:
        s_ = jnp.where(mask == 0.0, 1e-19, s_)
    p = jax.nn.softmax(s_, axis=-1)
    o = jnp.einsum("bhqk,bhkd->bhqd", p, v)
    return jnp.transpose(o, (0, 2, 1, 3)).reshape(b, s, N_HEADS * D_HEAD)


def layer_norm_ref(h, g, b):
    mu = jnp.mean(h, axis=-1, keepdims=True)
    var = jnp.mean((h - mu) ** 2, axis=-1, keepdims=True)
    return (h - mu) / jnp.sqrt(var + LN_EPS) * g + b


def decoder_block_ref(x, enc_k, enc_v, mask, p):
    op = mha_ref(x, x, x, p["wk1"], p["wq1"], p["wv1"], mask)
    n1 = layer_norm_ref(op + x, p["g1"], p["be1"])
    op2 = mha_ref(enc_k, n1, enc_v, p["wk2"], p["wq2"], p["wv2"], None)
    n2 = layer_norm_ref(op2 + n1, p["g2"], p["be2"])
    h = jnp.maximum(n2 @ p["w1"] + p["b1"], 0.0)
    ff = h @ p["w2"] + p["b2"]
    return layer_norm_ref(ff + n2, p["g3"], p["be3"])


# ---------------- main ----------------
if __name__ == "__main__":
    key = jax.random.PRNGKey(0)
    keys = jax.random.split(key, 16)

    def init(k, shape, scale=0.2):
        return (scale * jax.random.normal(k, shape)).astype(jnp.float32)

    params = {
        "wk1": init(keys[0], (D_HEAD, D_HEAD)),
        "wq1": init(keys[1], (D_HEAD, D_HEAD)),
        "wv1": init(keys[2], (D_HEAD, D_HEAD)),
        "wk2": init(keys[3], (D_HEAD, D_HEAD)),
        "wq2": init(keys[4], (D_HEAD, D_HEAD)),
        "wv2": init(keys[5], (D_HEAD, D_HEAD)),
        "w1": init(keys[6], (D_EMBED, D_FF)),
        "b1": init(keys[7], (1, D_FF)),
        "w2": init(keys[8], (D_FF, D_EMBED)),
        "b2": init(keys[9], (1, D_EMBED)),
        "g1": jnp.ones((1, D_EMBED), jnp.float32),
        "be1": jnp.zeros((1, D_EMBED), jnp.float32),
        "g2": jnp.ones((1, D_EMBED), jnp.float32),
        "be2": jnp.zeros((1, D_EMBED), jnp.float32),
        "g3": jnp.ones((1, D_EMBED), jnp.float32),
        "be3": jnp.zeros((1, D_EMBED), jnp.float32),
    }

    x = init(keys[10], (BATCH, SEQ, D_EMBED), scale=1.0)
    enc_k = init(keys[11], (BATCH, SEQ, D_EMBED), scale=1.0)
    enc_v = init(keys[12], (BATCH, SEQ, D_EMBED), scale=1.0)
    mask = jnp.tril(jnp.ones((SEQ, SEQ), jnp.float32))   # causal mask, 0 = masked

    consts = prepare_decoder_constants(params, mask)     # one-time init cost

    out = decoder_block(x, enc_k, enc_v, consts)
    out = jax.block_until_ready(out)

    ref = decoder_block_ref(x, enc_k, enc_v, mask, params)
    # Tolerance set by the bf16 MXU operands (~2^-8 relative per operand); the math
    # (mask fill value, LN, softmax structure) is otherwise identical to the reference.
    np.testing.assert_allclose(np.asarray(out), np.asarray(ref), rtol=5e-2, atol=5e-2)

    print("KERNEL_OK")
</pallas_src>

<mosaic_0001>
module attributes {stable_mosaic.version = 11 : i64} {
  func.func @decoder_block_kernel(%arg0: memref<16x32xf32, #tpu.memory_space<vmem>>, %arg1: memref<16x32xf32, #tpu.memory_space<vmem>>, %arg2: memref<16x32xf32, #tpu.memory_space<vmem>>, %arg3: memref<64x96xf32, #tpu.memory_space<vmem>>, %arg4: memref<32x192xbf16, #tpu.memory_space<vmem>>, %arg5: memref<64x128xbf16, #tpu.memory_space<vmem>>, %arg6: memref<8x128xf32, #tpu.memory_space<vmem>>, %arg7: memref<16x32xf32, #tpu.memory_space<vmem>>) attributes {dimension_semantics = [], scalar_prefetch = 0 : i64, scratch_operands = 0 : i64, tpu.core_type = #tpu.core_type<tc>} {
    %c0 = arith.constant 0 : index
    %c0_0 = arith.constant 0 : index
    %0 = vector.load %arg0[%c0, %c0_0] : memref<16x32xf32, #tpu.memory_space<vmem>>, vector<16x32xf32>
    %c0_1 = arith.constant 0 : index
    %c0_2 = arith.constant 0 : index
    %1 = vector.load %arg3[%c0_1, %c0_2] : memref<64x96xf32, #tpu.memory_space<vmem>>, vector<16x64xf32>
    %c16 = arith.constant 16 : index
    %c0_3 = arith.constant 0 : index
    %2 = vector.load %arg3[%c16, %c0_3] : memref<64x96xf32, #tpu.memory_space<vmem>>, vector<16x64xf32>
    %c32 = arith.constant 32 : index
    %c0_4 = arith.constant 0 : index
    %3 = vector.load %arg3[%c32, %c0_4] : memref<64x96xf32, #tpu.memory_space<vmem>>, vector<16x64xf32>
    %c48 = arith.constant 48 : index
    %c0_5 = arith.constant 0 : index
    %4 = vector.load %arg3[%c48, %c0_5] : memref<64x96xf32, #tpu.memory_space<vmem>>, vector<16x64xf32>
    %c0_6 = arith.constant 0 : index
    %c64 = arith.constant 64 : index
    %5 = vector.load %arg3[%c0_6, %c64] : memref<64x96xf32, #tpu.memory_space<vmem>>, vector<64x32xf32>
    %6 = arith.truncf %5 : vector<64x32xf32> to vector<64x32xbf16>
    %c0_7 = arith.constant 0 : index
    %c0_8 = arith.constant 0 : index
    %7 = vector.load %arg4[%c0_7, %c0_8] : memref<32x192xbf16, #tpu.memory_space<vmem>>, vector<32x96xbf16>
    %c0_9 = arith.constant 0 : index
    %c96 = arith.constant 96 : index
    %8 = vector.load %arg4[%c0_9, %c96] : memref<32x192xbf16, #tpu.memory_space<vmem>>, vector<32x64xbf16>
    %c0_10 = arith.constant 0 : index
    %c160 = arith.constant 160 : index
    %9 = vector.load %arg4[%c0_10, %c160] : memref<32x192xbf16, #tpu.memory_space<vmem>>, vector<32x32xbf16>
    %c0_11 = arith.constant 0 : index
    %c0_12 = arith.constant 0 : index
    %10 = vector.load %arg5[%c0_11, %c0_12] : memref<64x128xbf16, #tpu.memory_space<vmem>>, vector<32x128xbf16>
    %c32_13 = arith.constant 32 : index
    %c0_14 = arith.constant 0 : index
    %11 = vector.load %arg5[%c32_13, %c0_14] : memref<64x128xbf16, #tpu.memory_space<vmem>>, vector<32x128xbf16>
    %c0_15 = arith.constant 0 : index
    %c0_16 = arith.constant 0 : index
    %12 = vector.load %arg6[%c0_15, %c0_16] : memref<8x128xf32, #tpu.memory_space<vmem>>, vector<1x128xf32>
    %c1 = arith.constant 1 : index
    %c0_17 = arith.constant 0 : index
    %13 = vector.load %arg6[%c1, %c0_17] : memref<8x128xf32, #tpu.memory_space<vmem>>, vector<1x32xf32>
    %c2 = arith.constant 2 : index
    %c0_18 = arith.constant 0 : index
    %14 = vector.load %arg6[%c2, %c0_18] : memref<8x128xf32, #tpu.memory_space<vmem>>, vector<1x32xf32>
    %c3 = arith.constant 3 : index
    %c0_19 = arith.constant 0 : index
    %15 = vector.load %arg6[%c3, %c0_19] : memref<8x128xf32, #tpu.memory_space<vmem>>, vector<1x32xf32>
    %c4 = arith.constant 4 : index
    %c0_20 = arith.constant 0 : index
    %16 = vector.load %arg6[%c4, %c0_20] : memref<8x128xf32, #tpu.memory_space<vmem>>, vector<1x32xf32>
    %c5 = arith.constant 5 : index
    %c0_21 = arith.constant 0 : index
    %17 = vector.load %arg6[%c5, %c0_21] : memref<8x128xf32, #tpu.memory_space<vmem>>, vector<1x32xf32>
    %c6 = arith.constant 6 : index
    %c0_22 = arith.constant 0 : index
    %18 = vector.load %arg6[%c6, %c0_22] : memref<8x128xf32, #tpu.memory_space<vmem>>, vector<1x32xf32>
    %c7 = arith.constant 7 : index
    %c0_23 = arith.constant 0 : index
    %19 = vector.load %arg6[%c7, %c0_23] : memref<8x128xf32, #tpu.memory_space<vmem>>, vector<1x32xf32>
    %20 = arith.truncf %0 : vector<16x32xf32> to vector<16x32xbf16>
    %cst = arith.constant dense<0.000000e+00> : vector<16x96xf32>
    %21 = tpu.matmul %20, %7, %cst {dimension_numbers = #tpu.dot_dimension_numbers<[1], [0], [0], [1], [0, 0, 1, 1], [], []>} : vector<16x32xbf16>, vector<32x96xbf16>, vector<16x96xf32> -> vector<16x96xf32>
    %22 = vector.extract_strided_slice %21 {offsets = [0, 0], sizes = [16, 32], strides = [1, 1]} : vector<16x96xf32> to vector<16x32xf32>
    %23 = vector.extract_strided_slice %21 {offsets = [0, 32], sizes = [16, 32], strides = [1, 1]} : vector<16x96xf32> to vector<16x32xf32>
    %24 = vector.extract_strided_slice %21 {offsets = [0, 64], sizes = [16, 32], strides = [1, 1]} : vector<16x96xf32> to vector<16x32xf32>
    %25 = tpu.concatenate %22, %22, %22, %22 in 0 : vector<16x32xf32>, vector<16x32xf32>, vector<16x32xf32>, vector<16x32xf32> -> vector<64x32xf32>
    %26 = arith.mulf %25, %5 : vector<64x32xf32>
    %27 = arith.truncf %26 : vector<64x32xf32> to vector<64x32xbf16>
    %28 = tpu.concatenate %24, %24, %24, %24 in 0 : vector<16x32xf32>, vector<16x32xf32>, vector<16x32xf32>, vector<16x32xf32> -> vector<64x32xf32>
    %29 = arith.mulf %28, %5 : vector<64x32xf32>
    %30 = arith.truncf %29 : vector<64x32xf32> to vector<64x32xbf16>
    %31 = arith.truncf %23 : vector<16x32xf32> to vector<16x32xbf16>
    %cst_24 = arith.constant dense<0.000000e+00> : vector<16x64xf32>
    %32 = tpu.matmul %31, %27, %cst_24 {dimension_numbers = #tpu.dot_dimension_numbers<[1], [1], [0], [0], [0, 0, 1, 0], [], []>} : vector<16x32xbf16>, vector<64x32xbf16>, vector<16x64xf32> -> vector<16x64xf32>
    %33 = arith.mulf %32, %1 : vector<16x64xf32>
    %34 = arith.addf %33, %2 : vector<16x64xf32>
    %cst_25 = arith.constant dense<0xFF800000> : vector<16xf32>
    %35 = vector.multi_reduction <maximumf>, %34, %cst_25 [1] : vector<16x64xf32> to vector<16xf32>
    %36 = vector.shape_cast %35 : vector<16xf32> to vector<16x1xf32>
    %37 = vector.broadcast %36 : vector<16x1xf32> to vector<16x64xf32>
    %38 = arith.subf %34, %37 : vector<16x64xf32>
    %39 = math.exp %38 : vector<16x64xf32>
    %40 = arith.truncf %39 : vector<16x64xf32> to vector<16x64xbf16>
    %cst_26 = arith.constant dense<0.000000e+00> : vector<16x32xf32>
    %41 = tpu.matmul %40, %30, %cst_26 {dimension_numbers = #tpu.dot_dimension_numbers<[1], [0], [0], [1], [0, 0, 1, 1], [], []>} : vector<16x64xbf16>, vector<64x32xbf16>, vector<16x32xf32> -> vector<16x32xf32>
    %cst_27 = arith.constant dense<0.000000e+00> : vector<16x32xf32>
    %42 = tpu.matmul %40, %6, %cst_27 {dimension_numbers = #tpu.dot_dimension_numbers<[1], [0], [0], [1], [0, 0, 1, 1], [], []>} : vector<16x64xbf16>, vector<64x32xbf16>, vector<16x32xf32> -> vector<16x32xf32>
    %43 = arith.divf %41, %42 : vector<16x32xf32>
    %44 = arith.addf %43, %0 : vector<16x32xf32>
    %cst_28 = arith.constant dense<0.000000e+00> : vector<16xf32>
    %45 = vector.multi_reduction <add>, %44, %cst_28 [1] : vector<16x32xf32> to vector<16xf32>
    %46 = vector.shape_cast %45 : vector<16xf32> to vector<16x1xf32>
    %cst_29 = arith.constant 3.200000e+01 : f32
    %47 = vector.broadcast %cst_29 : f32 to vector<16x1xf32>
    %48 = arith.divf %46, %47 : vector<16x1xf32>
    %49 = vector.broadcast %48 : vector<16x1xf32> to vector<16x32xf32>
    %50 = arith.subf %44, %49 : vector<16x32xf32>
    %51 = arith.mulf %50, %50 : vector<16x32xf32>
    %cst_30 = arith.constant dense<0.000000e+00> : vector<16xf32>
    %52 = vector.multi_reduction <add>, %51, %cst_30 [1] : vector<16x32xf32> to vector<16xf32>
    %53 = vector.shape_cast %52 : vector<16xf32> to vector<16x1xf32>
    %cst_31 = arith.constant 3.200000e+01 : f32
    %54 = vector.broadcast %cst_31 : f32 to vector<16x1xf32>
    %55 = arith.divf %53, %54 : vector<16x1xf32>
    %cst_32 = arith.constant 9.99999974E-6 : f32
    %56 = vector.broadcast %cst_32 : f32 to vector<16x1xf32>
    %57 = arith.addf %55, %56 : vector<16x1xf32>
    %58 = math.rsqrt %57 : vector<16x1xf32>
    %59 = vector.broadcast %58 : vector<16x1xf32> to vector<16x32xf32>
    %60 = arith.mulf %50, %59 : vector<16x32xf32>
    %61 = vector.broadcast %14 : vector<1x32xf32> to vector<16x32xf32>
    %62 = arith.mulf %60, %61 : vector<16x32xf32>
    %63 = vector.broadcast %15 : vector<1x32xf32> to vector<16x32xf32>
    %64 = arith.addf %62, %63 : vector<16x32xf32>
    %c0_33 = arith.constant 0 : index
    %c0_34 = arith.constant 0 : index
    %65 = vector.load %arg1[%c0_33, %c0_34] : memref<16x32xf32, #tpu.memory_space<vmem>>, vector<16x32xf32>
    %c0_35 = arith.constant 0 : index
    %c0_36 = arith.constant 0 : index
    %66 = vector.load %arg2[%c0_35, %c0_36] : memref<16x32xf32, #tpu.memory_space<vmem>>, vector<16x32xf32>
    %67 = tpu.concatenate %65, %66 in 0 : vector<16x32xf32>, vector<16x32xf32> -> vector<32x32xf32>
    %68 = arith.truncf %67 : vector<32x32xf32> to vector<32x32xbf16>
    %cst_37 = arith.constant dense<0.000000e+00> : vector<32x64xf32>
    %69 = tpu.matmul %68, %8, %cst_37 {dimension_numbers = #tpu.dot_dimension_numbers<[1], [0], [0], [1], [0, 0, 1, 1], [], []>} : vector<32x32xbf16>, vector<32x64xbf16>, vector<32x64xf32> -> vector<32x64xf32>
    %70 = vector.extract_strided_slice %69 {offsets = [0, 0], sizes = [16, 32], strides = [1, 1]} : vector<32x64xf32> to vector<16x32xf32>
    %71 = vector.extract_strided_slice %69 {offsets = [16, 32], sizes = [16, 32], strides = [1, 1]} : vector<32x64xf32> to vector<16x32xf32>
    %72 = arith.truncf %64 : vector<16x32xf32> to vector<16x32xbf16>
    %cst_38 = arith.constant dense<0.000000e+00> : vector<16x32xf32>
    %73 = tpu.matmul %72, %9, %cst_38 {dimension_numbers = #tpu.dot_dimension_numbers<[1], [0], [0], [1], [0, 0, 1, 1], [], []>} : vector<16x32xbf16>, vector<32x32xbf16>, vector<16x32xf32> -> vector<16x32xf32>
    %74 = tpu.concatenate %70, %70, %70, %70 in 0 : vector<16x32xf32>, vector<16x32xf32>, vector<16x32xf32>, vector<16x32xf32> -> vector<64x32xf32>
    %75 = arith.mulf %74, %5 : vector<64x32xf32>
    %76 = arith.truncf %75 : vector<64x32xf32> to vector<64x32xbf16>
    %77 = tpu.concatenate %71, %71, %71, %71 in 0 : vector<16x32xf32>, vector<16x32xf32>, vector<16x32xf32>, vector<16x32xf32> -> vector<64x32xf32>
    %78 = arith.mulf %77, %5 : vector<64x32xf32>
    %79 = arith.truncf %78 : vector<64x32xf32> to vector<64x32xbf16>
    %80 = arith.truncf %73 : vector<16x32xf32> to vector<16x32xbf16>
    %cst_39 = arith.constant dense<0.000000e+00> : vector<16x64xf32>
    %81 = tpu.matmul %80, %76, %cst_39 {dimension_numbers = #tpu.dot_dimension_numbers<[1], [1], [0], [0], [0, 0, 1, 0], [], []>} : vector<16x32xbf16>, vector<64x32xbf16>, vector<16x64xf32> -> vector<16x64xf32>
    %82 = arith.mulf %81, %3 : vector<16x64xf32>
    %83 = arith.addf %82, %4 : vector<16x64xf32>
    %cst_40 = arith.constant dense<0xFF800000> : vector<16xf32>
    %84 = vector.multi_reduction <maximumf>, %83, %cst_40 [1] : vector<16x64xf32> to vector<16xf32>
    %85 = vector.shape_cast %84 : vector<16xf32> to vector<16x1xf32>
    %86 = vector.broadcast %85 : vector<16x1xf32> to vector<16x64xf32>
    %87 = arith.subf %83, %86 : vector<16x64xf32>
    %88 = math.exp %87 : vector<16x64xf32>
    %89 = arith.truncf %88 : vector<16x64xf32> to vector<16x64xbf16>
    %cst_41 = arith.constant dense<0.000000e+00> : vector<16x32xf32>
    %90 = tpu.matmul %89, %79, %cst_41 {dimension_numbers = #tpu.dot_dimension_numbers<[1], [0], [0], [1], [0, 0, 1, 1], [], []>} : vector<16x64xbf16>, vector<64x32xbf16>, vector<16x32xf32> -> vector<16x32xf32>
    %cst_42 = arith.constant dense<0.000000e+00> : vector<16x32xf32>
    %91 = tpu.matmul %89, %6, %cst_42 {dimension_numbers = #tpu.dot_dimension_numbers<[1], [0], [0], [1], [0, 0, 1, 1], [], []>} : vector<16x64xbf16>, vector<64x32xbf16>, vector<16x32xf32> -> vector<16x32xf32>
    %92 = arith.divf %90, %91 : vector<16x32xf32>
    %93 = arith.addf %92, %64 : vector<16x32xf32>
    %cst_43 = arith.constant dense<0.000000e+00> : vector<16xf32>
    %94 = vector.multi_reduction <add>, %93, %cst_43 [1] : vector<16x32xf32> to vector<16xf32>
    %95 = vector.shape_cast %94 : vector<16xf32> to vector<16x1xf32>
    %cst_44 = arith.constant 3.200000e+01 : f32
    %96 = vector.broadcast %cst_44 : f32 to vector<16x1xf32>
    %97 = arith.divf %95, %96 : vector<16x1xf32>
    %98 = vector.broadcast %97 : vector<16x1xf32> to vector<16x32xf32>
    %99 = arith.subf %93, %98 : vector<16x32xf32>
    %100 = arith.mulf %99, %99 : vector<16x32xf32>
    %cst_45 = arith.constant dense<0.000000e+00> : vector<16xf32>
    %101 = vector.multi_reduction <add>, %100, %cst_45 [1] : vector<16x32xf32> to vector<16xf32>
    %102 = vector.shape_cast %101 : vector<16xf32> to vector<16x1xf32>
    %cst_46 = arith.constant 3.200000e+01 : f32
    %103 = vector.broadcast %cst_46 : f32 to vector<16x1xf32>
    %104 = arith.divf %102, %103 : vector<16x1xf32>
    %cst_47 = arith.constant 9.99999974E-6 : f32
    %105 = vector.broadcast %cst_47 : f32 to vector<16x1xf32>
    %106 = arith.addf %104, %105 : vector<16x1xf32>
    %107 = math.rsqrt %106 : vector<16x1xf32>
    %108 = vector.broadcast %107 : vector<16x1xf32> to vector<16x32xf32>
    %109 = arith.mulf %99, %108 : vector<16x32xf32>
    %110 = vector.broadcast %16 : vector<1x32xf32> to vector<16x32xf32>
    %111 = arith.mulf %109, %110 : vector<16x32xf32>
    %112 = vector.broadcast %17 : vector<1x32xf32> to vector<16x32xf32>
    %113 = arith.addf %111, %112 : vector<16x32xf32>
    %114 = arith.truncf %113 : vector<16x32xf32> to vector<16x32xbf16>
    %cst_48 = arith.constant dense<0.000000e+00> : vector<16x128xf32>
    %115 = tpu.matmul %114, %10, %cst_48 {dimension_numbers = #tpu.dot_dimension_numbers<[1], [0], [0], [1], [0, 0, 1, 1], [], []>} : vector<16x32xbf16>, vector<32x128xbf16>, vector<16x128xf32> -> vector<16x128xf32>
    %116 = vector.broadcast %12 : vector<1x128xf32> to vector<16x128xf32>
    %117 = arith.addf %115, %116 : vector<16x128xf32>
    %cst_49 = arith.constant 0.000000e+00 : f32
    %118 = vector.broadcast %cst_49 : f32 to vector<16x128xf32>
    %119 = arith.maximumf %117, %118 : vector<16x128xf32>
    %120 = arith.truncf %119 : vector<16x128xf32> to vector<16x128xbf16>
    %cst_50 = arith.constant dense<0.000000e+00> : vector<16x32xf32>
    %121 = tpu.matmul %120, %11, %cst_50 {dimension_numbers = #tpu.dot_dimension_numbers<[1], [1], [0], [0], [0, 0, 1, 0], [], []>} : vector<16x128xbf16>, vector<32x128xbf16>, vector<16x32xf32> -> vector<16x32xf32>
    %122 = vector.broadcast %13 : vector<1x32xf32> to vector<16x32xf32>
    %123 = arith.addf %121, %122 : vector<16x32xf32>
    %124 = arith.addf %123, %113 : vector<16x32xf32>
    %cst_51 = arith.constant dense<0.000000e+00> : vector<16xf32>
    %125 = vector.multi_reduction <add>, %124, %cst_51 [1] : vector<16x32xf32> to vector<16xf32>
    %126 = vector.shape_cast %125 : vector<16xf32> to vector<16x1xf32>
    %cst_52 = arith.constant 3.200000e+01 : f32
    %127 = vector.broadcast %cst_52 : f32 to vector<16x1xf32>
    %128 = arith.divf %126, %127 : vector<16x1xf32>
    %129 = vector.broadcast %128 : vector<16x1xf32> to vector<16x32xf32>
    %130 = arith.subf %124, %129 : vector<16x32xf32>
    %131 = arith.mulf %130, %130 : vector<16x32xf32>
    %cst_53 = arith.constant dense<0.000000e+00> : vector<16xf32>
    %132 = vector.multi_reduction <add>, %131, %cst_53 [1] : vector<16x32xf32> to vector<16xf32>
    %133 = vector.shape_cast %132 : vector<16xf32> to vector<16x1xf32>
    %cst_54 = arith.constant 3.200000e+01 : f32
    %134 = vector.broadcast %cst_54 : f32 to vector<16x1xf32>
    %135 = arith.divf %133, %134 : vector<16x1xf32>
    %cst_55 = arith.constant 9.99999974E-6 : f32
    %136 = vector.broadcast %cst_55 : f32 to vector<16x1xf32>
    %137 = arith.addf %135, %136 : vector<16x1xf32>
    %138 = math.rsqrt %137 : vector<16x1xf32>
    %139 = vector.broadcast %138 : vector<16x1xf32> to vector<16x32xf32>
    %140 = arith.mulf %130, %139 : vector<16x32xf32>
    %141 = vector.broadcast %18 : vector<1x32xf32> to vector<16x32xf32>
    %142 = arith.mulf %140, %141 : vector<16x32xf32>
    %143 = vector.broadcast %19 : vector<1x32xf32> to vector<16x32xf32>
    %144 = arith.addf %142, %143 : vector<16x32xf32>
    %c0_56 = arith.constant 0 : index
    %c0_57 = arith.constant 0 : index
    %145 = vector.load %arg7[%c0_56, %c0_57] : memref<16x32xf32, #tpu.memory_space<vmem>>, vector<16x32xf32>
    tpu.vector_store %arg7[%c0_56, %c0_57], %144 {strides = array<i32>} : memref<16x32xf32, #tpu.memory_space<vmem>>, vector<16x32xf32>,
    return
  }
}

</mosaic_0001>

<llo_original>
// kernel: decoder_block.1
$region0: #{decoder_block.1}
  #allocation0 [shape = 'u32[]', space=smem, size = 0x4, offset = 0x4, fixed_abs, tag = 'smem constant byte address 0x4 - core index']
  #allocation1 [shape = 'u32[144,128]{1,0:T(1,128)}', space=vmem, size = 0x12000, scoped, tag = 'internal scratch']
  %s0 = inlined_call_operand.hbm [shape: f32[16,32], index: 0, kind: input, shape index: {}]
  %s1 = inlined_call_operand.hbm [shape: f32[16,32], index: 1, kind: input, shape index: {}]
  %s2 = inlined_call_operand.hbm [shape: f32[16,32], index: 2, kind: input, shape index: {}]
  %s3 = inlined_call_operand.hbm [shape: f32[64,96], index: 3, kind: input, shape index: {}]
  %s4 = inlined_call_operand.hbm [shape: bf16[32,192], index: 4, kind: input, shape index: {}]
  %s5 = inlined_call_operand.hbm [shape: bf16[64,128], index: 5, kind: input, shape index: {}]
  %s6 = inlined_call_operand.vmem [shape: f32[8,128], index: 6, kind: input, shape index: {}]
  %s7 = inlined_call_operand.hbm [shape: f32[16,32], index: 7, kind: output, shape index: {}]
  %s8 = sld [smem:[#allocation0]]
  $region62: #{decoder_block.1} parent=0
    _
  %s10 = ssub.s32 1, %s8
  %s11 = scalar_select 0, %s10, %s8
  $region1: #{decoder_block.1} parent=0
    #allocation2 [shape = 'u8[8192]{0}', space=vmem, size = 0x2000, scoped, tag = 'input window, operand 0, single buffered']
    #allocation3 [shape = 's32[1]{0}', space=sflag, size = 0x4, scoped, tag = 'scoped memory for decoder_block.1']
    #allocation4 [shape = 's32[1]{0}', space=sflag, size = 0x4, scoped, tag = 'scoped memory for decoder_block.1']
    #allocation5 [shape = 'u8[8192]{0}', space=vmem, size = 0x2000, scoped, tag = 'input window, operand 1, single buffered']
    #allocation6 [shape = 's32[1]{0}', space=sflag, size = 0x4, scoped, tag = 'scoped memory for decoder_block.1']
    #allocation7 [shape = 'u8[8192]{0}', space=vmem, size = 0x2000, scoped, tag = 'input window, operand 2, single buffered']
    #allocation8 [shape = 'u8[32768]{0}', space=vmem, size = 0x8000, scoped, tag = 'input window, operand 3, single buffered']
    #allocation9 [shape = 's32[1]{0}', space=sflag, size = 0x4, scoped, tag = 'scoped memory for decoder_block.1']
    #allocation10 [shape = 'u8[16384]{0}', space=vmem, size = 0x4000, scoped, tag = 'input window, operand 4, single buffered']
    #allocation11 [shape = 'u8[16384]{0}', space=vmem, size = 0x4000, scoped, tag = 'input window, operand 5, single buffered']
    #allocation12 [shape = 's32[1]{0}', space=sflag, size = 0x4, scoped, tag = 'scoped memory for decoder_block.1']
    #allocation13 [shape = 'u8[8192]{0}', space=vmem, size = 0x2000, scoped, tag = 'output window, operand 0, single buffered']
    %12 = vsyncpa [#allocation3], 0
    %13 = vsyncpa [#allocation6], 0
    %14 = vsyncpa [#allocation9], 0
    %15 = vsyncpa [#allocation12], 0
    %16 = vsyncpa [#allocation4], 0
    // Predicated region
    $region2: #{decoder_block.1} parent=1 // pred_check
      _
    $region3: #{decoder_block.1} parent=1 // pred_check_branch
      %18 = sbr.rel (0) target = $region5
    $region4: #{decoder_block.1} parent=1 // pred_region
      %s20 = ssub.s32 256, 256
      %21 = vsyncadd [#allocation3], %s20
      %s22 = sshll.u32 [#allocation2], 4
      %s23 = int_to_ptr.vmem [resolvable:$true] %s22
      %28 = dma.hbm_to_vmem [thread:$0]  %s0, 256, %s23, [#allocation3], 128, 128, 8
    $region5: #{decoder_block.1} parent=1 // pred_fallthru
      _
    // Predicated region
    $region6: #{decoder_block.1} parent=1 // pred_check
      _
    $region7: #{decoder_block.1} parent=1 // pred_check_branch
      %30 = sbr.rel (0) target = $region9
    $region8: #{decoder_block.1} parent=1 // pred_region
      %s32 = ssub.s32 256, 256
      %33 = vsyncadd [#allocation6], %s32
      %s34 = sshll.u32 [#allocation5], 4
      %s35 = int_to_ptr.vmem [resolvable:$true] %s34
      %40 = dma.hbm_to_vmem [thread:$0]  %s1, 256, %s35, [#allocation6], 128, 128, 8
    $region9: #{decoder_block.1} parent=1 // pred_fallthru
      _
    // Predicated region
    $region10: #{decoder_block.1} parent=1 // pred_check
      _
    $region11: #{decoder_block.1} parent=1 // pred_check_branch
      %42 = sbr.rel (0) target = $region13
    $region12: #{decoder_block.1} parent=1 // pred_region
      %s44 = ssub.s32 256, 256
      %45 = vsyncadd [#allocation6], %s44
      %s46 = sshll.u32 [#allocation7], 4
      %s47 = int_to_ptr.vmem [resolvable:$true] %s46
      %52 = dma.hbm_to_vmem [thread:$0]  %s2, 256, %s47, [#allocation6], 128, 128, 8
    $region13: #{decoder_block.1} parent=1 // pred_fallthru
      _
    // Predicated region
    $region14: #{decoder_block.1} parent=1 // pred_check
      _
    $region15: #{decoder_block.1} parent=1 // pred_check_branch
      %54 = sbr.rel (0) target = $region17
    $region16: #{decoder_block.1} parent=1 // pred_region
      %s56 = ssub.s32 1024, 1024
      %57 = vsyncadd [#allocation9], %s56
      %s58 = sshll.u32 [#allocation8], 4
      %s59 = int_to_ptr.vmem [resolvable:$true] %s58
      %64 = dma.hbm_to_vmem [thread:$0]  %s3, 1024, %s59, [#allocation9], 128, 128, 8
    $region17: #{decoder_block.1} parent=1 // pred_fallthru
      _
    // Predicated region
    $region18: #{decoder_block.1} parent=1 // pred_check
      _
    $region19: #{decoder_block.1} parent=1 // pred_check_branch
      %66 = sbr.rel (0) target = $region21
    $region20: #{decoder_block.1} parent=1 // pred_region
      %s68 = ssub.s32 512, 512
      %69 = vsyncadd [#allocation9], %s68
      %s70 = sshll.u32 [#allocation10], 4
      %s71 = int_to_ptr.vmem [resolvable:$true] %s70
      %76 = dma.hbm_to_vmem [thread:$0]  %s4, 512, %s71, [#allocation9], 128, 128, 8
    $region21: #{decoder_block.1} parent=1 // pred_fallthru
      _
    // Predicated region
    $region22: #{decoder_block.1} parent=1 // pred_check
      _
    $region23: #{decoder_block.1} parent=1 // pred_check_branch
      %78 = sbr.rel (0) target = $region25
    $region24: #{decoder_block.1} parent=1 // pred_region
      %s80 = ssub.s32 512, 512
      %81 = vsyncadd [#allocation12], %s80
      %s82 = sshll.u32 [#allocation11], 4
      %s83 = int_to_ptr.vmem [resolvable:$true] %s82
      %88 = dma.hbm_to_vmem [thread:$0]  %s5, 512, %s83, [#allocation12], 64, 64, 4
    $region25: #{decoder_block.1} parent=1 // pred_fallthru
      _
    // Predicated region
    $region26: #{decoder_block.1} parent=1 // pred_check
      _
    $region27: #{decoder_block.1} parent=1 // pred_check_branch
      %90 = sbr.rel (0) target = $region29
    $region28: #{decoder_block.1} parent=1 // pred_region
      _
    $region29: #{decoder_block.1} parent=1 // pred_fallthru
      _
    // Predicated region
    $region30: #{decoder_block.1} parent=1 // pred_check
      _
    $region31: #{decoder_block.1} parent=1 // pred_check_branch
      %92 = sbr.rel (0) target = $region33
    $region32: #{decoder_block.1} parent=1 // pred_region
      %93 = dma.done [#allocation3], 256
    $region33: #{decoder_block.1} parent=1 // pred_fallthru
      _
    // Predicated region
    $region34: #{decoder_block.1} parent=1 // pred_check
      _
    $region35: #{decoder_block.1} parent=1 // pred_check_branch
      %95 = sbr.rel (0) target = $region37
    $region36: #{decoder_block.1} parent=1 // pred_region
      %96 = dma.done [#allocation6], 256
    $region37: #{decoder_block.1} parent=1 // pred_fallthru
      _
    // Predicated region
    $region38: #{decoder_block.1} parent=1 // pred_check
      _
    $region39: #{decoder_block.1} parent=1 // pred_check_branch
      %98 = sbr.rel (0) target = $region41
    $region40: #{decoder_block.1} parent=1 // pred_region
      %99 = dma.done [#allocation6], 256
    $region41: #{decoder_block.1} parent=1 // pred_fallthru
      _
    // Predicated region
    $region42: #{decoder_block.1} parent=1 // pred_check
      _
    $region43: #{decoder_block.1} parent=1 // pred_check_branch
      %101 = sbr.rel (0) target = $region45
    $region44: #{decoder_block.1} parent=1 // pred_region
      %102 = dma.done [#allocation9], 1024
    $region45: #{decoder_block.1} parent=1 // pred_fallthru
      _
    // Predicated region
    $region46: #{decoder_block.1} parent=1 // pred_check
      _
    $region47: #{decoder_block.1} parent=1 // pred_check_branch
      %104 = sbr.rel (0) target = $region49
    $region48: #{decoder_block.1} parent=1 // pred_region
      %105 = dma.done [#allocation9], 512
    $region49: #{decoder_block.1} parent=1 // pred_fallthru
      _
    // Predicated region
    $region50: #{decoder_block.1} parent=1 // pred_check
      _
    $region51: #{decoder_block.1} parent=1 // pred_check_branch
      %107 = sbr.rel (0) target = $region53
    $region52: #{decoder_block.1} parent=1 // pred_region
      %108 = dma.done [#allocation12], 512
    $region53: #{decoder_block.1} parent=1 // pred_fallthru
      _
    %v110 = vld [vmem:[#allocation2] sm:$0xff]
    %v111 = vld [vmem:[#allocation2 + $0x8] sm:$0xff]
    %v112 = vld [vmem:[#allocation8] sm:$0xff]
    %v113 = vld [vmem:[#allocation8 + $0x8] sm:$0xff]
    %v114 = vld [vmem:[#allocation8 + $0x10] sm:$0xff]
    %v115 = vld [vmem:[#allocation8 + $0x18] sm:$0xff]
    %v116 = vld [vmem:[#allocation8 + $0x20] sm:$0xff]
    %v117 = vld [vmem:[#allocation8 + $0x28] sm:$0xff]
    %v118 = vld [vmem:[#allocation8 + $0x30] sm:$0xff]
    %v119 = vld [vmem:[#allocation8 + $0x38] sm:$0xff]
    %v120 = vpack.c.bf16 %v113, %v112
    %v121 = vpack.c.bf16 %v115, %v114
    %v122 = vpack.c.bf16 %v117, %v116
    %v123 = vpack.c.bf16 %v119, %v118
    %v124 = vld [vmem:[#allocation10] sm:$0xf]
    %v125 = vld [vmem:[#allocation10 + $0x8] sm:$0xf]
    %v126 = vld [vmem:[#allocation10 + $0x10] sm:$0xf]
    %v127 = vld [vmem:[#allocation10 + $0x18] sm:$0xf]
    %v128 = vld [vmem:[#allocation10] sm:$0xff]
    %v129 = vld [vmem:[#allocation10 + $0x8] sm:$0xff]
    %v130 = vld [vmem:[#allocation10 + $0x10] sm:$0xff]
    %v131 = vld [vmem:[#allocation10 + $0x18] sm:$0xff]
    %v132 = vld [vmem:[#allocation10 + $0x4] sm:$0xf]
    %v133 = vld [vmem:[#allocation10 + $0xc] sm:$0xf]
    %v134 = vld [vmem:[#allocation10 + $0x14] sm:$0xf]
    %v135 = vld [vmem:[#allocation10 + $0x1c] sm:$0xf]
    %v136 = vld [vmem:[#allocation11] sm:$0xf]
    %v137 = vld [vmem:[#allocation11 + $0x4] sm:$0xf]
    %v138 = vld [vmem:[#allocation11 + $0x8] sm:$0xf]
    %v139 = vld [vmem:[#allocation11 + $0xc] sm:$0xf]
    %v140 = vld [vmem:[#allocation11 + $0x10] sm:$0xf]
    %v141 = vld [vmem:[#allocation11 + $0x14] sm:$0xf]
    %v142 = vld [vmem:[#allocation11 + $0x18] sm:$0xf]
    %v143 = vld [vmem:[#allocation11 + $0x1c] sm:$0xf]
    %v144 = vld [vmem:[%s6] sm:$0x1]
    %v145 = vld [vmem:[%s6 + $0x1] sm:$0x1]
    %v146 = vld [vmem:[%s6 + $0x2] sm:$0x1]
    %v147 = vld [vmem:[%s6 + $0x3] sm:$0x1]
    %v148 = vld [vmem:[%s6 + $0x4] sm:$0x1]
    %v149 = vld [vmem:[%s6 + $0x5] sm:$0x1]
    %v150 = vld [vmem:[%s6 + $0x6] sm:$0x1]
    %v151 = vld [vmem:[%s6 + $0x7] sm:$0x1]
    %v152 = vpack.c.bf16 %v111, %v110
    %v157 = vunpack.c.l.b16 %v124
    %v158 = vunpack.c.l.b16 %v125
    %v159 = vunpack.c.l.b16 %v126
    %v160 = vunpack.c.l.b16 %v127
    %v161 = vpack.c.b16 %v158, %v157
    %v162 = vpack.c.b16 %v160, %v159
    %vm165 = vcmask 261120
    %v167 = vsel %vm165, %v152, 0
    %169 = vmatprep.subr.bf16.mxu0 0
    %170 = vmatpush1.bf16.msra.mxu0 0
    %171 = vmatprep.subr.bf16.mxu0 0
    %172 = vmatpush1.bf16.msra.mxu0 0
    %173 = vmatprep.subr.bf16.mxu0 0
    %174 = vmatpush1.bf16.msra.mxu0 0
    %175 = vmatprep.subr.bf16.mxu0 0
    %176 = vmatpush1.bf16.msra.mxu0 0
    %177 = vmatprep.subr.bf16.mxu0 0
    %178 = vmatpush1.bf16.msra.mxu0 0
    %179 = vmatprep.subr.bf16.mxu0 0
    %180 = vmatpush1.bf16.msra.mxu0 0
    %181 = vmatprep.subr.bf16.mxu0 0
    %182 = vmatpush1.bf16.msra.mxu0 %v162
    %183 = vmatprep.subr.bf16.mxu0 0
    %184 = vmatpush1.bf16.msra.mxu0 %v161
    %185 = vmatprep.subr.bf16.mxu0 0
    %186 = vmatpush2.bf16.msra.mxu0 0
    %187 = vmatprep.subr.bf16.mxu0 0
    %188 = vmatpush2.bf16.msra.mxu0 0
    %189 = vmatprep.subr.bf16.mxu0 0
    %190 = vmatpush2.bf16.msra.mxu0 0
    %191 = vmatprep.subr.bf16.mxu0 0
    %192 = vmatpush2.bf16.msra.mxu0 0
    %193 = vmatprep.subr.bf16.mxu0 0
    %194 = vmatpush2.bf16.msra.mxu0 0
    %195 = vmatprep.subr.bf16.mxu0 0
    %196 = vmatpush2.bf16.msra.mxu0 0
    %197 = vmatprep.subr.bf16.mxu0 0
    %198 = vmatpush2.bf16.msra.mxu0 0
    %199 = vmatprep.subr.bf16.mxu0 0
    %200 = vmatpush2.bf16.msra.mxu0 0
    %201 = vmatprep.mubr.bf16.mxu0 0
    %202 = vmatmul.mubr.bf16.gmra.mxu0 %v167
    %v203 = vpop.f32.mrf.mxu0
    %v204 = vadd.f32 0.0, %v203
    %v205 = vpop.f32.mrf.mxu0
    %v206 = vpop.f32.mrf.mxu0
    %v207 = vadd.f32 0.0, %v206
    %v208 = vpop.f32.mrf.mxu0
    %209 = vdwg.mxu0
    %218 = vrot.lane.b32.xlu0 %v112, 64
    %v219 = vpop.permute.xlu0 %218
    %220 = vrot.lane.b32.xlu0 %v113, 64
    %v221 = vpop.permute.xlu0 %220
    %222 = vrot.lane.b32.xlu0 %v114, 64
    %v223 = vpop.permute.xlu0 %222
    %224 = vrot.lane.b32.xlu0 %v115, 64
    %v225 = vpop.permute.xlu0 %224
    %226 = vrot.lane.b32.xlu0 %v116, 64
    %v227 = vpop.permute.xlu0 %226
    %228 = vrot.lane.b32.xlu0 %v117, 64
    %v229 = vpop.permute.xlu0 %228
    %230 = vrot.lane.b32.xlu0 %v118, 64
    %v231 = vpop.permute.xlu0 %230
    %232 = vrot.lane.b32.xlu0 %v119, 64
    %v233 = vpop.permute.xlu0 %232
    %v242 = vmul.f32 %v204, %v219
    %v243 = vmul.f32 %v207, %v221
    %v244 = vmul.f32 %v204, %v223
    %v245 = vmul.f32 %v207, %v225
    %v246 = vmul.f32 %v204, %v227
    %v247 = vmul.f32 %v207, %v229
    %v248 = vmul.f32 %v204, %v231
    %v249 = vmul.f32 %v207, %v233
    %v250 = vpack.c.bf16 %v243, %v242
    %v251 = vpack.c.bf16 %v245, %v244
    %v252 = vpack.c.bf16 %v247, %v246
    %v253 = vpack.c.bf16 %v249, %v248
    %v254 = vmul.f32 %v204, %v112
    %v255 = vmul.f32 %v207, %v113
    %v256 = vmul.f32 %v204, %v114
    %v257 = vmul.f32 %v207, %v115
    %v258 = vmul.f32 %v204, %v116
    %v259 = vmul.f32 %v207, %v117
    %v260 = vmul.f32 %v204, %v118
    %v261 = vmul.f32 %v207, %v119
    %v262 = vpack.c.bf16 %v255, %v254
    %v263 = vpack.c.bf16 %v257, %v256
    %v264 = vpack.c.bf16 %v259, %v258
    %v265 = vpack.c.bf16 %v261, %v260
    %v266 = vpack.c.bf16 %v207, %v204
    %268 = vrot.lane.b32.xlu0 %v266, 96
    %v269 = vpop.permute.xlu0 %268
    %v271 = vsel %vm165, %v269, 0
    %v274 = vsel %vm165, %v250, 0
    %v277 = vsel %vm165, %v251, 0
    %v280 = vsel %vm165, %v252, 0
    %v283 = vsel %vm165, %v253, 0
    %285 = vmatprep.subr.bf16.mxu0 0
    %286 = vmatpush1.bf16.xpose.msra.mxu0 0
    %287 = vmatprep.subr.bf16.mxu0 0
    %288 = vmatpush1.bf16.xpose.msra.mxu0 0
    %289 = vmatprep.subr.bf16.mxu0 0
    %290 = vmatpush1.bf16.xpose.msra.mxu0 0
    %291 = vmatprep.subr.bf16.mxu0 0
    %292 = vmatpush1.bf16.xpose.msra.mxu0 0
    %293 = vmatprep.subr.bf16.mxu0 0
    %294 = vmatpush1.bf16.xpose.msra.mxu0 %v283
    %295 = vmatprep.subr.bf16.mxu0 0
    %296 = vmatpush1.bf16.xpose.msra.mxu0 %v280
    %297 = vmatprep.subr.bf16.mxu0 0
    %298 = vmatpush1.bf16.xpose.msra.mxu0 %v277
    %299 = vmatprep.subr.bf16.mxu0 0
    %300 = vmatpush1.bf16.xpose.msra.mxu0 %v274
    %301 = vmatprep.subr.bf16.mxu0 0
    %302 = vmatpush2.bf16.xpose.msra.mxu0 0
    %303 = vmatprep.subr.bf16.mxu0 0
    %304 = vmatpush2.bf16.xpose.msra.mxu0 0
    %305 = vmatprep.subr.bf16.mxu0 0
    %306 = vmatpush2.bf16.xpose.msra.mxu0 0
    %307 = vmatprep.subr.bf16.mxu0 0
    %308 = vmatpush2.bf16.xpose.msra.mxu0 0
    %309 = vmatprep.subr.bf16.mxu0 0
    %310 = vmatpush2.bf16.xpose.msra.mxu0 0
    %311 = vmatprep.subr.bf16.mxu0 0
    %312 = vmatpush2.bf16.xpose.msra.mxu0 0
    %313 = vmatprep.subr.bf16.mxu0 0
    %314 = vmatpush2.bf16.xpose.msra.mxu0 0
    %315 = vmatprep.subr.bf16.mxu0 0
    %316 = vmatpush2.bf16.xpose.msra.mxu0 0
    %317 = vmatprep.mubr.bf16.mxu0 0
    %318 = vmatmul.mubr.bf16.gmra.mxu0 %v271
    %v319 = vpop.f32.mrf.mxu0
    %v320 = vadd.f32 0.0, %v319
    %v321 = vpop.f32.mrf.mxu0
    %v322 = vpop.f32.mrf.mxu0
    %v323 = vadd.f32 0.0, %v322
    %v324 = vpop.f32.mrf.mxu0
    %325 = vdwg.mxu0
    %v326 = vmul.f32 %v320, %v112
    %v327 = vmul.f32 %v323, %v113
    %v328 = vadd.f32 %v326, %v114
    %v329 = vadd.f32 %v327, %v115
    %vm330 = vcmask 523264
    %v331 = vsel %vm330, %v328, -inf
    %332 = vmax.xlane.f32.xlu0 %v331
    %v333 = vpop.xlane.xlu0 %332
    %v334 = vsel %vm330, %v329, -inf
    %335 = vmax.xlane.f32.xlu0 %v334
    %v336 = vpop.xlane.xlu0 %335
    %v337 = vsub.f32 %v328, %v333
    %v338 = vsub.f32 %v329, %v336
    %v339 = vmul.f32 %v337, 1.442695
    %v340 = vpow.pop %v339
    %v341 = vmul.f32 %v338, 1.442695
    %v342 = vpow.pop %v341
    %v343 = vpack.c.bf16 %v342, %v340
    %348 = vrot.lane.b32.xlu0 %v262, 64
    %v349 = vpop.permute.xlu0 %348
    %350 = vrot.lane.b32.xlu0 %v263, 64
    %v351 = vpop.permute.xlu0 %350
    %352 = vrot.lane.b32.xlu0 %v264, 64
    %v353 = vpop.permute.xlu0 %352
    %354 = vrot.lane.b32.xlu0 %v265, 64
    %v355 = vpop.permute.xlu0 %354
    %v361 = vsel %vm330, %v343, 0
    %363 = vmatprep.subr.bf16.mxu0 0
    %364 = vmatpush1.bf16.msra.mxu0 0
    %365 = vmatprep.subr.bf16.mxu0 0
    %366 = vmatpush1.bf16.msra.mxu0 0
    %367 = vmatprep.subr.bf16.mxu0 0
    %368 = vmatpush1.bf16.msra.mxu0 0
    %369 = vmatprep.subr.bf16.mxu0 0
    %370 = vmatpush1.bf16.msra.mxu0 0
    %371 = vmatprep.subr.bf16.mxu0 0
    %372 = vmatpush1.bf16.msra.mxu0 %v355
    %373 = vmatprep.subr.bf16.mxu0 0
    %374 = vmatpush1.bf16.msra.mxu0 %v353
    %375 = vmatprep.subr.bf16.mxu0 0
    %376 = vmatpush1.bf16.msra.mxu0 %v351
    %377 = vmatprep.subr.bf16.mxu0 0
    %378 = vmatpush1.bf16.msra.mxu0 %v349
    %379 = vmatprep.subr.bf16.mxu0 0
    %380 = vmatpush2.bf16.msra.mxu0 0
    %381 = vmatprep.subr.bf16.mxu0 0
    %382 = vmatpush2.bf16.msra.mxu0 0
    %383 = vmatprep.subr.bf16.mxu0 0
    %384 = vmatpush2.bf16.msra.mxu0 0
    %385 = vmatprep.subr.bf16.mxu0 0
    %386 = vmatpush2.bf16.msra.mxu0 0
    %387 = vmatprep.subr.bf16.mxu0 0
    %388 = vmatpush2.bf16.msra.mxu0 0
    %389 = vmatprep.subr.bf16.mxu0 0
    %390 = vmatpush2.bf16.msra.mxu0 0
    %391 = vmatprep.subr.bf16.mxu0 0
    %392 = vmatpush2.bf16.msra.mxu0 0
    %393 = vmatprep.subr.bf16.mxu0 0
    %394 = vmatpush2.bf16.msra.mxu0 0
    %395 = vmatprep.mubr.bf16.mxu0 0
    %396 = vmatmul.mubr.bf16.gmra.mxu0 %v361
    %v397 = vpop.f32.mrf.mxu0
    %v398 = vadd.f32 0.0, %v397
    %v399 = vpop.f32.mrf.mxu0
    %v400 = vpop.f32.mrf.mxu0
    %v401 = vadd.f32 0.0, %v400
    %v402 = vpop.f32.mrf.mxu0
    %403 = vdwg.mxu0
    %408 = vrot.lane.b32.xlu0 %v120, 64
    %v409 = vpop.permute.xlu0 %408
    %410 = vrot.lane.b32.xlu0 %v121, 64
    %v411 = vpop.permute.xlu0 %410
    %412 = vrot.lane.b32.xlu0 %v122, 64
    %v413 = vpop.permute.xlu0 %412
    %414 = vrot.lane.b32.xlu0 %v123, 64
    %v415 = vpop.permute.xlu0 %414
    %420 = vmatprep.subr.bf16.mxu0 0
    %421 = vmatpush1.bf16.msra.mxu0 0
    %422 = vmatprep.subr.bf16.mxu0 0
    %423 = vmatpush1.bf16.msra.mxu0 0
    %424 = vmatprep.subr.bf16.mxu0 0
    %425 = vmatpush1.bf16.msra.mxu0 0
    %426 = vmatprep.subr.bf16.mxu0 0
    %427 = vmatpush1.bf16.msra.mxu0 0
    %428 = vmatprep.subr.bf16.mxu0 0
    %429 = vmatpush1.bf16.msra.mxu0 %v415
    %430 = vmatprep.subr.bf16.mxu0 0
    %431 = vmatpush1.bf16.msra.mxu0 %v413
    %432 = vmatprep.subr.bf16.mxu0 0
    %433 = vmatpush1.bf16.msra.mxu0 %v411
    %434 = vmatprep.subr.bf16.mxu0 0
    %435 = vmatpush1.bf16.msra.mxu0 %v409
    %436 = vmatprep.subr.bf16.mxu0 0
    %437 = vmatpush2.bf16.msra.mxu0 0
    %438 = vmatprep.subr.bf16.mxu0 0
    %439 = vmatpush2.bf16.msra.mxu0 0
    %440 = vmatprep.subr.bf16.mxu0 0
    %441 = vmatpush2.bf16.msra.mxu0 0
    %442 = vmatprep.subr.bf16.mxu0 0
    %443 = vmatpush2.bf16.msra.mxu0 0
    %444 = vmatprep.subr.bf16.mxu0 0
    %445 = vmatpush2.bf16.msra.mxu0 0
    %446 = vmatprep.subr.bf16.mxu0 0
    %447 = vmatpush2.bf16.msra.mxu0 0
    %448 = vmatprep.subr.bf16.mxu0 0
    %449 = vmatpush2.bf16.msra.mxu0 0
    %450 = vmatprep.subr.bf16.mxu0 0
    %451 = vmatpush2.bf16.msra.mxu0 0
    %452 = vmatprep.mubr.bf16.mxu0 0
    %453 = vmatmul.mubr.bf16.gmra.mxu0 %v361
    %v454 = vpop.f32.mrf.mxu0
    %v455 = vadd.f32 0.0, %v454
    %v456 = vpop.f32.mrf.mxu0
    %v457 = vpop.f32.mrf.mxu0
    %v458 = vadd.f32 0.0, %v457
    %v459 = vpop.f32.mrf.mxu0
    %460 = vdwg.mxu0
    %v461 = vrcp.pop %v455
    %v462 = vmul.f32 %v398, %v461
    %v463 = vrcp.pop %v458
    %v464 = vmul.f32 %v401, %v463
    %v465 = vadd.f32 %v462, %v110
    %v466 = vadd.f32 %v464, %v111
    %v467 = vsel %vm165, %v465, 0.0
    %468 = vadd.xlane.f32.xlu0 %v467
    %v469 = vpop.xlane.xlu0 %468
    %v470 = vsel %vm165, %v466, 0.0
    %471 = vadd.xlane.f32.xlu0 %v470
    %v472 = vpop.xlane.xlu0 %471
    %v473 = vrcp.pop 32.0
    %v474 = vmul.f32 %v469, %v473
    %v475 = vmul.f32 %v472, %v473
    %v476 = vsub.f32 %v465, %v474
    %v477 = vsub.f32 %v466, %v475
    %v478 = vmul.f32 %v476, %v476
    %v479 = vmul.f32 %v477, %v477
    %v480 = vsel %vm165, %v478, 0.0
    %481 = vadd.xlane.f32.xlu0 %v480
    %v482 = vpop.xlane.xlu0 %481
    %v483 = vsel %vm165, %v479, 0.0
    %484 = vadd.xlane.f32.xlu0 %v483
    %v485 = vpop.xlane.xlu0 %484
    %v486 = vmul.f32 %v482, %v473
    %v487 = vmul.f32 %v485, %v473
    %v488 = vadd.f32 %v486, 1e-05
    %v489 = vadd.f32 %v487, 1e-05
    %v490 = vrsqrt.pop %v488
    %v491 = vrsqrt.pop %v489
    %v492 = vmul.f32 %v476, %v490
    %v493 = vmul.f32 %v477, %v491
    %v494 = vlaneseq
    %v495 = vshrl.u32 %v494, 7
    %v496 = vsub.s32 0, %v495
    %v497 = vrot.slane %v146, %v496
    %v498 = vmul.f32 %v492, %v497
    %v499 = vmul.f32 %v493, %v497
    %v500 = vlaneseq
    %v501 = vshrl.u32 %v500, 7
    %v502 = vsub.s32 0, %v501
    %v503 = vrot.slane %v147, %v502
    %v504 = vadd.f32 %v498, %v503
    %v505 = vadd.f32 %v499, %v503
    %v506 = vld [vmem:[#allocation5] sm:$0xff]
    %v507 = vld [vmem:[#allocation5 + $0x8] sm:$0xff]
    %v508 = vld [vmem:[#allocation7] sm:$0xff]
    %v509 = vld [vmem:[#allocation7 + $0x8] sm:$0xff]
    %v510 = vpack.c.bf16 %v507, %v506
    %v511 = vpack.c.bf16 %v509, %v508
    %v516 = vunpack.c.l.b16 %v128
    %v517 = vunpack.c.h.b16 %v128
    %v518 = vunpack.c.l.b16 %v129
    %v519 = vunpack.c.h.b16 %v129
    %v520 = vunpack.c.l.b16 %v130
    %v521 = vunpack.c.h.b16 %v130
    %v522 = vunpack.c.l.b16 %v131
    %v523 = vunpack.c.h.b16 %v131
    %v524 = vpack.c.b16 %v518, %v516
    %v525 = vpack.c.b16 %v519, %v517
    %v526 = vpack.c.b16 %v522, %v520
    %v527 = vpack.c.b16 %v523, %v521
    %528 = vrot.lane.b32.xlu0 %v524, 32
    %v529 = vpop.permute.xlu0 %528
    %530 = vrot.lane.b32.xlu0 %v525, 32
    %v531 = vpop.permute.xlu0 %530
    %532 = vrot.lane.b32.xlu0 %v526, 32
    %v533 = vpop.permute.xlu0 %532
    %534 = vrot.lane.b32.xlu0 %v527, 32
    %v535 = vpop.permute.xlu0 %534
    %vm536 = vcmask 261120
    %v537 = vsel %vm536, %v529, %v531
    %v538 = vsel %vm536, %v533, %v535
    %v542 = vsel %vm165, %v510, 0
    %v545 = vsel %vm165, %v511, 0
    %547 = vmatprep.subr.bf16.mxu0 0
    %548 = vmatpush1.bf16.msra.mxu0 0
    %549 = vmatprep.subr.bf16.mxu0 0
    %550 = vmatpush1.bf16.msra.mxu0 0
    %551 = vmatprep.subr.bf16.mxu0 0
    %552 = vmatpush1.bf16.msra.mxu0 0
    %553 = vmatprep.subr.bf16.mxu0 0
    %554 = vmatpush1.bf16.msra.mxu0 0
    %555 = vmatprep.subr.bf16.mxu0 0
    %556 = vmatpush1.bf16.msra.mxu0 0
    %557 = vmatprep.subr.bf16.mxu0 0
    %558 = vmatpush1.bf16.msra.mxu0 0
    %559 = vmatprep.subr.bf16.mxu0 0
    %560 = vmatpush1.bf16.msra.mxu0 %v538
    %561 = vmatprep.subr.bf16.mxu0 0
    %562 = vmatpush1.bf16.msra.mxu0 %v537
    %563 = vmatprep.subr.bf16.mxu0 0
    %564 = vmatpush2.bf16.msra.mxu0 0
    %565 = vmatprep.subr.bf16.mxu0 0
    %566 = vmatpush2.bf16.msra.mxu0 0
    %567 = vmatprep.subr.bf16.mxu0 0
    %568 = vmatpush2.bf16.msra.mxu0 0
    %569 = vmatprep.subr.bf16.mxu0 0
    %570 = vmatpush2.bf16.msra.mxu0 0
    %571 = vmatprep.subr.bf16.mxu0 0
    %572 = vmatpush2.bf16.msra.mxu0 0
    %573 = vmatprep.subr.bf16.mxu0 0
    %574 = vmatpush2.bf16.msra.mxu0 0
    %575 = vmatprep.subr.bf16.mxu0 0
    %576 = vmatpush2.bf16.msra.mxu0 0
    %577 = vmatprep.subr.bf16.mxu0 0
    %578 = vmatpush2.bf16.msra.mxu0 0
    %579 = vmatprep.mubr.bf16.mxu0 0
    %580 = vmatmul.mubr.bf16.gmra.mxu0 %v542
    %v581 = vpop.f32.mrf.mxu0
    %v582 = vadd.f32 0.0, %v581
    %v583 = vpop.f32.mrf.mxu0
    %v584 = vpop.f32.mrf.mxu0
    %v585 = vadd.f32 0.0, %v584
    %v586 = vpop.f32.mrf.mxu0
    %587 = vmatprep.mubr.bf16.mxu0 0
    %588 = vmatmul.mubr.bf16.gmra.mxu0 %v545
    %v589 = vpop.f32.mrf.mxu0
    %v590 = vadd.f32 0.0, %v589
    %v591 = vpop.f32.mrf.mxu0
    %v592 = vpop.f32.mrf.mxu0
    %v593 = vadd.f32 0.0, %v592
    %v594 = vpop.f32.mrf.mxu0
    %595 = vdwg.mxu0
    %v596 = vpack.c.bf16 %v505, %v504
    %v601 = vunpack.c.l.b16 %v132
    %v602 = vunpack.c.l.b16 %v133
    %v603 = vunpack.c.l.b16 %v134
    %v604 = vunpack.c.l.b16 %v135
    %v605 = vpack.c.b16 %v602, %v601
    %v606 = vpack.c.b16 %v604, %v603
    %607 = vrot.lane.b32.xlu0 %v605, 96
    %v608 = vpop.permute.xlu0 %607
    %609 = vrot.lane.b32.xlu0 %v606, 96
    %v610 = vpop.permute.xlu0 %609
    %v614 = vsel %vm165, %v596, 0
    %616 = vmatprep.subr.bf16.mxu0 0
    %617 = vmatpush1.bf16.msra.mxu0 0
    %618 = vmatprep.subr.bf16.mxu0 0
    %619 = vmatpush1.bf16.msra.mxu0 0
    %620 = vmatprep.subr.bf16.mxu0 0
    %621 = vmatpush1.bf16.msra.mxu0 0
    %622 = vmatprep.subr.bf16.mxu0 0
    %623 = vmatpush1.bf16.msra.mxu0 0
    %624 = vmatprep.subr.bf16.mxu0 0
    %625 = vmatpush1.bf16.msra.mxu0 0
    %626 = vmatprep.subr.bf16.mxu0 0
    %627 = vmatpush1.bf16.msra.mxu0 0
    %628 = vmatprep.subr.bf16.mxu0 0
    %629 = vmatpush1.bf16.msra.mxu0 %v610
    %630 = vmatprep.subr.bf16.mxu0 0
    %631 = vmatpush1.bf16.msra.mxu0 %v608
    %632 = vmatprep.subr.bf16.mxu0 0
    %633 = vmatpush2.bf16.msra.mxu0 0
    %634 = vmatprep.subr.bf16.mxu0 0
    %635 = vmatpush2.bf16.msra.mxu0 0
    %636 = vmatprep.subr.bf16.mxu0 0
    %637 = vmatpush2.bf16.msra.mxu0 0
    %638 = vmatprep.subr.bf16.mxu0 0
    %639 = vmatpush2.bf16.msra.mxu0 0
    %640 = vmatprep.subr.bf16.mxu0 0
    %641 = vmatpush2.bf16.msra.mxu0 0
    %642 = vmatprep.subr.bf16.mxu0 0
    %643 = vmatpush2.bf16.msra.mxu0 0
    %644 = vmatprep.subr.bf16.mxu0 0
    %645 = vmatpush2.bf16.msra.mxu0 0
    %646 = vmatprep.subr.bf16.mxu0 0
    %647 = vmatpush2.bf16.msra.mxu0 0
    %648 = vmatprep.mubr.bf16.mxu0 0
    %649 = vmatmul.mubr.bf16.gmra.mxu0 %v614
    %v650 = vpop.f32.mrf.mxu0
    %v651 = vadd.f32 0.0, %v650
    %v652 = vpop.f32.mrf.mxu0
    %v653 = vpop.f32.mrf.mxu0
    %v654 = vadd.f32 0.0, %v653
    %v655 = vpop.f32.mrf.mxu0
    %656 = vdwg.mxu0
    %v657 = vmul.f32 %v582, %v219
    %v658 = vmul.f32 %v585, %v221
    %v659 = vmul.f32 %v582, %v223
    %v660 = vmul.f32 %v585, %v225
    %v661 = vmul.f32 %v582, %v227
    %v662 = vmul.f32 %v585, %v229
    %v663 = vmul.f32 %v582, %v231
    %v664 = vmul.f32 %v585, %v233
    %v665 = vpack.c.bf16 %v658, %v657
    %v666 = vpack.c.bf16 %v660, %v659
    %v667 = vpack.c.bf16 %v662, %v661
    %v668 = vpack.c.bf16 %v664, %v663
    %669 = vrot.lane.b32.xlu0 %v112, 96
    %v670 = vpop.permute.xlu0 %669
    %671 = vrot.lane.b32.xlu0 %v113, 96
    %v672 = vpop.permute.xlu0 %671
    %673 = vrot.lane.b32.xlu0 %v114, 96
    %v674 = vpop.permute.xlu0 %673
    %675 = vrot.lane.b32.xlu0 %v115, 96
    %v676 = vpop.permute.xlu0 %675
    %677 = vrot.lane.b32.xlu0 %v116, 96
    %v678 = vpop.permute.xlu0 %677
    %679 = vrot.lane.b32.xlu0 %v117, 96
    %v680 = vpop.permute.xlu0 %679
    %681 = vrot.lane.b32.xlu0 %v118, 96
    %v682 = vpop.permute.xlu0 %681
    %683 = vrot.lane.b32.xlu0 %v119, 96
    %v684 = vpop.permute.xlu0 %683
    %v693 = vmul.f32 %v590, %v670
    %v694 = vmul.f32 %v593, %v672
    %v695 = vmul.f32 %v590, %v674
    %v696 = vmul.f32 %v593, %v676
    %v697 = vmul.f32 %v590, %v678
    %v698 = vmul.f32 %v593, %v680
    %v699 = vmul.f32 %v590, %v682
    %v700 = vmul.f32 %v593, %v684
    %v701 = vpack.c.bf16 %v694, %v693
    %v702 = vpack.c.bf16 %v696, %v695
    %v703 = vpack.c.bf16 %v698, %v697
    %v704 = vpack.c.bf16 %v700, %v699
    %v705 = vpack.c.bf16 %v654, %v651
    %v707 = vsel %vm165, %v705, 0
    %v710 = vsel %vm165, %v665, 0
    %v713 = vsel %vm165, %v666, 0
    %v716 = vsel %vm165, %v667, 0
    %v719 = vsel %vm165, %v668, 0
    %721 = vmatprep.subr.bf16.mxu0 0
    %722 = vmatpush1.bf16.xpose.msra.mxu0 0
    %723 = vmatprep.subr.bf16.mxu0 0
    %724 = vmatpush1.bf16.xpose.msra.mxu0 0
    %725 = vmatprep.subr.bf16.mxu0 0
    %726 = vmatpush1.bf16.xpose.msra.mxu0 0
    %727 = vmatprep.subr.bf16.mxu0 0
    %728 = vmatpush1.bf16.xpose.msra.mxu0 0
    %729 = vmatprep.subr.bf16.mxu0 0
    %730 = vmatpush1.bf16.xpose.msra.mxu0 %v719
    %731 = vmatprep.subr.bf16.mxu0 0
    %732 = vmatpush1.bf16.xpose.msra.mxu0 %v716
    %733 = vmatprep.subr.bf16.mxu0 0
    %734 = vmatpush1.bf16.xpose.msra.mxu0 %v713
    %735 = vmatprep.subr.bf16.mxu0 0
    %736 = vmatpush1.bf16.xpose.msra.mxu0 %v710
    %737 = vmatprep.subr.bf16.mxu0 0
    %738 = vmatpush2.bf16.xpose.msra.mxu0 0
    %739 = vmatprep.subr.bf16.mxu0 0
    %740 = vmatpush2.bf16.xpose.msra.mxu0 0
    %741 = vmatprep.subr.bf16.mxu0 0
    %742 = vmatpush2.bf16.xpose.msra.mxu0 0
    %743 = vmatprep.subr.bf16.mxu0 0
    %744 = vmatpush2.bf16.xpose.msra.mxu0 0
    %745 = vmatprep.subr.bf16.mxu0 0
    %746 = vmatpush2.bf16.xpose.msra.mxu0 0
    %747 = vmatprep.subr.bf16.mxu0 0
    %748 = vmatpush2.bf16.xpose.msra.mxu0 0
    %749 = vmatprep.subr.bf16.mxu0 0
    %750 = vmatpush2.bf16.xpose.msra.mxu0 0
    %751 = vmatprep.subr.bf16.mxu0 0
    %752 = vmatpush2.bf16.xpose.msra.mxu0 0
    %753 = vmatprep.mubr.bf16.mxu0 0
    %754 = vmatmul.mubr.bf16.gmra.mxu0 %v707
    %v755 = vpop.f32.mrf.mxu0
    %v756 = vadd.f32 0.0, %v755
    %v757 = vpop.f32.mrf.mxu0
    %v758 = vpop.f32.mrf.mxu0
    %v759 = vadd.f32 0.0, %v758
    %v760 = vpop.f32.mrf.mxu0
    %761 = vdwg.mxu0
    %v762 = vmul.f32 %v756, %v116
    %v763 = vmul.f32 %v759, %v117
    %v764 = vadd.f32 %v762, %v118
    %v765 = vadd.f32 %v763, %v119
    %v766 = vsel %vm330, %v764, -inf
    %767 = vmax.xlane.f32.xlu0 %v766
    %v768 = vpop.xlane.xlu0 %767
    %v769 = vsel %vm330, %v765, -inf
    %770 = vmax.xlane.f32.xlu0 %v769
    %v771 = vpop.xlane.xlu0 %770
    %v772 = vsub.f32 %v764, %v768
    %v773 = vsub.f32 %v765, %v771
    %v774 = vmul.f32 %v772, 1.442695
    %v775 = vpow.pop %v774
    %v776 = vmul.f32 %v773, 1.442695
    %v777 = vpow.pop %v776
    %v778 = vpack.c.bf16 %v777, %v775
    %783 = vrot.lane.b32.xlu0 %v701, 96
    %v784 = vpop.permute.xlu0 %783
    %785 = vrot.lane.b32.xlu0 %v702, 96
    %v786 = vpop.permute.xlu0 %785
    %787 = vrot.lane.b32.xlu0 %v703, 96
    %v788 = vpop.permute.xlu0 %787
    %789 = vrot.lane.b32.xlu0 %v704, 96
    %v790 = vpop.permute.xlu0 %789
    %v796 = vsel %vm330, %v778, 0
    %798 = vmatprep.subr.bf16.mxu0 0
    %799 = vmatpush1.bf16.msra.mxu0 0
    %800 = vmatprep.subr.bf16.mxu0 0
    %801 = vmatpush1.bf16.msra.mxu0 0
    %802 = vmatprep.subr.bf16.mxu0 0
    %803 = vmatpush1.bf16.msra.mxu0 0
    %804 = vmatprep.subr.bf16.mxu0 0
    %805 = vmatpush1.bf16.msra.mxu0 0
    %806 = vmatprep.subr.bf16.mxu0 0
    %807 = vmatpush1.bf16.msra.mxu0 %v790
    %808 = vmatprep.subr.bf16.mxu0 0
    %809 = vmatpush1.bf16.msra.mxu0 %v788
    %810 = vmatprep.subr.bf16.mxu0 0
    %811 = vmatpush1.bf16.msra.mxu0 %v786
    %812 = vmatprep.subr.bf16.mxu0 0
    %813 = vmatpush1.bf16.msra.mxu0 %v784
    %814 = vmatprep.subr.bf16.mxu0 0
    %815 = vmatpush2.bf16.msra.mxu0 0
    %816 = vmatprep.subr.bf16.mxu0 0
    %817 = vmatpush2.bf16.msra.mxu0 0
    %818 = vmatprep.subr.bf16.mxu0 0
    %819 = vmatpush2.bf16.msra.mxu0 0
    %820 = vmatprep.subr.bf16.mxu0 0
    %821 = vmatpush2.bf16.msra.mxu0 0
    %822 = vmatprep.subr.bf16.mxu0 0
    %823 = vmatpush2.bf16.msra.mxu0 0
    %824 = vmatprep.subr.bf16.mxu0 0
    %825 = vmatpush2.bf16.msra.mxu0 0
    %826 = vmatprep.subr.bf16.mxu0 0
    %827 = vmatpush2.bf16.msra.mxu0 0
    %828 = vmatprep.subr.bf16.mxu0 0
    %829 = vmatpush2.bf16.msra.mxu0 0
    %830 = vmatprep.mubr.bf16.mxu0 0
    %831 = vmatmul.mubr.bf16.gmra.mxu0 %v796
    %v832 = vpop.f32.mrf.mxu0
    %v833 = vadd.f32 0.0, %v832
    %v834 = vpop.f32.mrf.mxu0
    %v835 = vpop.f32.mrf.mxu0
    %v836 = vadd.f32 0.0, %v835
    %v837 = vpop.f32.mrf.mxu0
    %838 = vdwg.mxu0
    %839 = vmatprep.subr.bf16.mxu0 0
    %840 = vmatpush1.bf16.msra.mxu0 0
    %841 = vmatprep.subr.bf16.mxu0 0
    %842 = vmatpush1.bf16.msra.mxu0 0
    %843 = vmatprep.subr.bf16.mxu0 0
    %844 = vmatpush1.bf16.msra.mxu0 0
    %845 = vmatprep.subr.bf16.mxu0 0
    %846 = vmatpush1.bf16.msra.mxu0 0
    %847 = vmatprep.subr.bf16.mxu0 0
    %848 = vmatpush1.bf16.msra.mxu0 %v415
    %849 = vmatprep.subr.bf16.mxu0 0
    %850 = vmatpush1.bf16.msra.mxu0 %v413
    %851 = vmatprep.subr.bf16.mxu0 0
    %852 = vmatpush1.bf16.msra.mxu0 %v411
    %853 = vmatprep.subr.bf16.mxu0 0
    %854 = vmatpush1.bf16.msra.mxu0 %v409
    %855 = vmatprep.subr.bf16.mxu0 0
    %856 = vmatpush2.bf16.msra.mxu0 0
    %857 = vmatprep.subr.bf16.mxu0 0
    %858 = vmatpush2.bf16.msra.mxu0 0
    %859 = vmatprep.subr.bf16.mxu0 0
    %860 = vmatpush2.bf16.msra.mxu0 0
    %861 = vmatprep.subr.bf16.mxu0 0
    %862 = vmatpush2.bf16.msra.mxu0 0
    %863 = vmatprep.subr.bf16.mxu0 0
    %864 = vmatpush2.bf16.msra.mxu0 0
    %865 = vmatprep.subr.bf16.mxu0 0
    %866 = vmatpush2.bf16.msra.mxu0 0
    %867 = vmatprep.subr.bf16.mxu0 0
    %868 = vmatpush2.bf16.msra.mxu0 0
    %869 = vmatprep.subr.bf16.mxu0 0
    %870 = vmatpush2.bf16.msra.mxu0 0
    %871 = vmatprep.mubr.bf16.mxu0 0
    %872 = vmatmul.mubr.bf16.gmra.mxu0 %v796
    %v873 = vpop.f32.mrf.mxu0
    %v874 = vadd.f32 0.0, %v873
    %v875 = vpop.f32.mrf.mxu0
    %v876 = vpop.f32.mrf.mxu0
    %v877 = vadd.f32 0.0, %v876
    %v878 = vpop.f32.mrf.mxu0
    %879 = vdwg.mxu0
    %v880 = vrcp.pop %v874
    %v881 = vmul.f32 %v833, %v880
    %v882 = vrcp.pop %v877
    %v883 = vmul.f32 %v836, %v882
    %v884 = vadd.f32 %v881, %v504
    %v885 = vadd.f32 %v883, %v505
    %v886 = vsel %vm165, %v884, 0.0
    %887 = vadd.xlane.f32.xlu0 %v886
    %v888 = vpop.xlane.xlu0 %887
    %v889 = vsel %vm165, %v885, 0.0
    %890 = vadd.xlane.f32.xlu0 %v889
    %v891 = vpop.xlane.xlu0 %890
    %v892 = vmul.f32 %v888, %v473
    %v893 = vmul.f32 %v891, %v473
    %v894 = vsub.f32 %v884, %v892
    %v895 = vsub.f32 %v885, %v893
    %v896 = vmul.f32 %v894, %v894
    %v897 = vmul.f32 %v895, %v895
    %v898 = vsel %vm165, %v896, 0.0
    %899 = vadd.xlane.f32.xlu0 %v898
    %v900 = vpop.xlane.xlu0 %899
    %v901 = vsel %vm165, %v897, 0.0
    %902 = vadd.xlane.f32.xlu0 %v901
    %v903 = vpop.xlane.xlu0 %902
    %v904 = vmul.f32 %v900, %v473
    %v905 = vmul.f32 %v903, %v473
    %v906 = vadd.f32 %v904, 1e-05
    %v907 = vadd.f32 %v905, 1e-05
    %v908 = vrsqrt.pop %v906
    %v909 = vrsqrt.pop %v907
    %v910 = vmul.f32 %v894, %v908
    %v911 = vmul.f32 %v895, %v909
    %v912 = vlaneseq
    %v913 = vshrl.u32 %v912, 7
    %v914 = vsub.s32 0, %v913
    %v915 = vrot.slane %v148, %v914
    %v916 = vmul.f32 %v910, %v915
    %v917 = vmul.f32 %v911, %v915
    %v918 = vlaneseq
    %v919 = vshrl.u32 %v918, 7
    %v920 = vsub.s32 0, %v919
    %v921 = vrot.slane %v149, %v920
    %v922 = vadd.f32 %v916, %v921
    %v923 = vadd.f32 %v917, %v921
    %v924 = vpack.c.bf16 %v923, %v922
    %v925 = vlaneseq
    %v926 = vshrl.u32 %v925, 7
    %v927 = vsub.s32 0, %v926
    %v928 = vrot.slane %v144, %v927
    %v933 = vunpack.c.l.b16 %v136
    %v934 = vunpack.c.l.b16 %v137
    %v935 = vunpack.c.l.b16 %v138
    %v936 = vunpack.c.l.b16 %v139
    %v937 = vpack.c.b16 %v934, %v933
    %v938 = vpack.c.b16 %v936, %v935
    %v942 = vsel %vm165, %v924, 0
    %944 = vmatprep.subr.bf16.mxu0 0
    %945 = vmatpush1.bf16.msra.mxu0 0
    %946 = vmatprep.subr.bf16.mxu0 0
    %947 = vmatpush1.bf16.msra.mxu0 0
    %948 = vmatprep.subr.bf16.mxu0 0
    %949 = vmatpush1.bf16.msra.mxu0 0
    %950 = vmatprep.subr.bf16.mxu0 0
    %951 = vmatpush1.bf16.msra.mxu0 0
    %952 = vmatprep.subr.bf16.mxu0 0
    %953 = vmatpush1.bf16.msra.mxu0 0
    %954 = vmatprep.subr.bf16.mxu0 0
    %955 = vmatpush1.bf16.msra.mxu0 0
    %956 = vmatprep.subr.bf16.mxu0 0
    %957 = vmatpush1.bf16.msra.mxu0 %v938
    %958 = vmatprep.subr.bf16.mxu0 0
    %959 = vmatpush1.bf16.msra.mxu0 %v937
    %960 = vmatprep.subr.bf16.mxu0 0
    %961 = vmatpush2.bf16.msra.mxu0 0
    %962 = vmatprep.subr.bf16.mxu0 0
    %963 = vmatpush2.bf16.msra.mxu0 0
    %964 = vmatprep.subr.bf16.mxu0 0
    %965 = vmatpush2.bf16.msra.mxu0 0
    %966 = vmatprep.subr.bf16.mxu0 0
    %967 = vmatpush2.bf16.msra.mxu0 0
    %968 = vmatprep.subr.bf16.mxu0 0
    %969 = vmatpush2.bf16.msra.mxu0 0
    %970 = vmatprep.subr.bf16.mxu0 0
    %971 = vmatpush2.bf16.msra.mxu0 0
    %972 = vmatprep.subr.bf16.mxu0 0
    %973 = vmatpush2.bf16.msra.mxu0 0
    %974 = vmatprep.subr.bf16.mxu0 0
    %975 = vmatpush2.bf16.msra.mxu0 0
    %976 = vmatprep.mubr.bf16.mxu0 0
    %977 = vmatmul.mubr.bf16.gmra.mxu0 %v942
    %v978 = vpop.f32.mrf.mxu0
    %v979 = vadd.f32 %v928, %v978
    %v980 = vpop.f32.mrf.mxu0
    %v981 = vpop.f32.mrf.mxu0
    %v982 = vadd.f32 %v928, %v981
    %v983 = vpop.f32.mrf.mxu0
    %984 = vdwg.mxu0
    %v985 = vmax.f32 %v979, 0.0
    %v986 = vmax.f32 %v982, 0.0
    %v987 = vpack.c.bf16 %v986, %v985
    %v988 = vlaneseq
    %v989 = vshrl.u32 %v988, 7
    %v990 = vsub.s32 0, %v989
    %v991 = vrot.slane %v145, %v990
    %v996 = vunpack.c.l.b16 %v140
    %v997 = vunpack.c.l.b16 %v141
    %v998 = vunpack.c.l.b16 %v142
    %v999 = vunpack.c.l.b16 %v143
    %v1000 = vpack.c.b16 %v997, %v996
    %v1001 = vpack.c.b16 %v999, %v998
    %1004 = vmatprep.subr.bf16.mxu0 0
    %1005 = vmatpush1.bf16.xpose.msra.mxu0 0
    %1006 = vmatprep.subr.bf16.mxu0 0
    %1007 = vmatpush1.bf16.xpose.msra.mxu0 0
    %1008 = vmatprep.subr.bf16.mxu0 0
    %1009 = vmatpush1.bf16.xpose.msra.mxu0 0
    %1010 = vmatprep.subr.bf16.mxu0 0
    %1011 = vmatpush1.bf16.xpose.msra.mxu0 0
    %1012 = vmatprep.subr.bf16.mxu0 0
    %1013 = vmatpush1.bf16.xpose.msra.mxu0 0
    %1014 = vmatprep.subr.bf16.mxu0 0
    %1015 = vmatpush1.bf16.xpose.msra.mxu0 0
    %1016 = vmatprep.subr.bf16.mxu0 0
    %1017 = vmatpush1.bf16.xpose.msra.mxu0 %v1001
    %1018 = vmatprep.subr.bf16.mxu0 0
    %1019 = vmatpush1.bf16.xpose.msra.mxu0 %v1000
    %1020 = vmatprep.subr.bf16.mxu0 0
    %1021 = vmatpush2.bf16.xpose.msra.mxu0 0
    %1022 = vmatprep.subr.bf16.mxu0 0
    %1023 = vmatpush2.bf16.xpose.msra.mxu0 0
    %1024 = vmatprep.subr.bf16.mxu0 0
    %1025 = vmatpush2.bf16.xpose.msra.mxu0 0
    %1026 = vmatprep.subr.bf16.mxu0 0
    %1027 = vmatpush2.bf16.xpose.msra.mxu0 0
    %1028 = vmatprep.subr.bf16.mxu0 0
    %1029 = vmatpush2.bf16.xpose.msra.mxu0 0
    %1030 = vmatprep.subr.bf16.mxu0 0
    %1031 = vmatpush2.bf16.xpose.msra.mxu0 0
    %1032 = vmatprep.subr.bf16.mxu0 0
    %1033 = vmatpush2.bf16.xpose.msra.mxu0 0
    %1034 = vmatprep.subr.bf16.mxu0 0
    %1035 = vmatpush2.bf16.xpose.msra.mxu0 0
    %1036 = vmatprep.mubr.bf16.mxu0 0
    %1037 = vmatmul.mubr.bf16.gmra.mxu0 %v987
    %v1038 = vpop.f32.mrf.mxu0
    %v1039 = vadd.f32 %v991, %v1038
    %v1040 = vpop.f32.mrf.mxu0
    %v1041 = vpop.f32.mrf.mxu0
    %v1042 = vadd.f32 %v991, %v1041
    %v1043 = vpop.f32.mrf.mxu0
    %1044 = vdwg.mxu0
    %v1045 = vadd.f32 %v1039, %v922
    %v1046 = vadd.f32 %v1042, %v923
    %v1047 = vsel %vm165, %v1045, 0.0
    %1048 = vadd.xlane.f32.xlu0 %v1047
    %v1049 = vpop.xlane.xlu0 %1048
    %v1050 = vsel %vm165, %v1046, 0.0
    %1051 = vadd.xlane.f32.xlu0 %v1050
    %v1052 = vpop.xlane.xlu0 %1051
    %v1053 = vmul.f32 %v1049, %v473
    %v1054 = vmul.f32 %v1052, %v473
    %v1055 = vsub.f32 %v1045, %v1053
    %v1056 = vsub.f32 %v1046, %v1054
    %v1057 = vmul.f32 %v1055, %v1055
    %v1058 = vmul.f32 %v1056, %v1056
    %v1059 = vsel %vm165, %v1057, 0.0
    %1060 = vadd.xlane.f32.xlu0 %v1059
    %v1061 = vpop.xlane.xlu0 %1060
    %v1062 = vsel %vm165, %v1058, 0.0
    %1063 = vadd.xlane.f32.xlu0 %v1062
    %v1064 = vpop.xlane.xlu0 %1063
    %v1065 = vmul.f32 %v1061, %v473
    %v1066 = vmul.f32 %v1064, %v473
    %v1067 = vadd.f32 %v1065, 1e-05
    %v1068 = vadd.f32 %v1066, 1e-05
    %v1069 = vrsqrt.pop %v1067
    %v1070 = vrsqrt.pop %v1068
    %v1071 = vmul.f32 %v1055, %v1069
    %v1072 = vmul.f32 %v1056, %v1070
    %v1073 = vlaneseq
    %v1074 = vshrl.u32 %v1073, 7
    %v1075 = vsub.s32 0, %v1074
    %v1076 = vrot.slane %v150, %v1075
    %v1077 = vmul.f32 %v1071, %v1076
    %v1078 = vmul.f32 %v1072, %v1076
    %v1079 = vlaneseq
    %v1080 = vshrl.u32 %v1079, 7
    %v1081 = vsub.s32 0, %v1080
    %v1082 = vrot.slane %v151, %v1081
    %v1083 = vadd.f32 %v1077, %v1082
    %v1084 = vadd.f32 %v1078, %v1082
    %1085 = vst.msk [vmem:[#allocation13] sm:$0xff] %vm165, %v1083
    %1086 = vst.msk [vmem:[#allocation13 + $0x8] sm:$0xff] %vm165, %v1084
    // Predicated region
    $region54: #{decoder_block.1} parent=1 // pred_check
      _
    $region55: #{decoder_block.1} parent=1 // pred_check_branch
      %1088 = sbr.rel (0) target = $region57
    $region56: #{decoder_block.1} parent=1 // pred_region
      %s1090 = ssub.s32 256, 256
      %1091 = vsyncadd [#allocation4], %s1090
      %s1092 = sshll.u32 [#allocation13], 4
      %s1093 = int_to_ptr.vmem [resolvable:$true] %s1092
      %1098 = dma.vmem_to_hbm [thread:$0]  %s1093, 256, %s7, [#allocation4], 128, 128, 8
    $region57: #{decoder_block.1} parent=1 // pred_fallthru
      _
    // Predicated region
    $region58: #{decoder_block.1} parent=1 // pred_check
      _
    $region59: #{decoder_block.1} parent=1 // pred_check_branch
      %1100 = sbr.rel (0) target = $region61
    $region60: #{decoder_block.1} parent=1 // pred_region
      %1101 = dma.done [#allocation4], 256
    $region61: #{decoder_block.1} parent=1 // pred_fallthru
      _
    %1102 = vsyncpa [#allocation3], 1
    %1103 = vsyncpa [#allocation6], 1
    %1104 = vsyncpa [#allocation9], 1
    %1105 = vsyncpa [#allocation12], 1
    %1106 = vsyncpa [#allocation4], 1

</llo_original>
